<compile_context>
chip_gen: v5e
topology: v5e:2x2
jax: 0.10.0
libtpu: 0.0.40
codegen_flags: <defaults>
</compile_context>

<pallas_src>
import functools

import jax
import jax.numpy as jnp
from jax import lax
from jax.experimental import pallas as pl
from jax.experimental.pallas import tpu as pltpu


def _gated_fusion_kernel(x1_ref, x2_ref, w1_ref, w2_ref, wg_ref, o_ref, gsum_ref,
                         *, tile_n, n_valid, n_pad):
    p = pl.program_id(0)   # 0: accumulate global gate sum, 1: write fused output
    i = pl.program_id(1)   # row-tile index

    @pl.when((p == 0) & (i == 0))
    def _():
        gsum_ref[...] = jnp.zeros_like(gsum_ref)

    # h1/h2: (tile_n, size_out), MXU matmuls with f32 accumulation.
    h1 = jnp.tanh(jnp.dot(x1_ref[...], w1_ref[...],
                          preferred_element_type=jnp.float32))
    h2 = jnp.tanh(jnp.dot(x2_ref[...], w2_ref[...],
                          preferred_element_type=jnp.float32))

    @pl.when(p == 0)
    def _():
        # gate = sigmoid(cat(h1,h2) @ Wg^T) == sigmoid(sum(h1*wg1 + h2*wg2, -1))
        # VPU multiply + XLU lane reduce instead of two width-1 MXU matmuls.
        wg1 = wg_ref[0:1, :]                                  # (1, size_out)
        wg2 = wg_ref[1:2, :]                                  # (1, size_out)
        logits = jnp.sum(h1 * wg1 + h2 * wg2, axis=-1, keepdims=True)  # (tile_n, 1)
        gate = jax.nn.sigmoid(logits)
        if n_pad != n_valid:  # mask zero-padded rows out of the global mean
            row = i * tile_n + lax.broadcasted_iota(jnp.int32, (tile_n, 1), 0)
            gate = jnp.where(row < n_valid, gate, 0.0)
        gsum_ref[...] += jnp.sum(gate, keepdims=True)

    @pl.when(p == 1)
    def _():
        g_mean = gsum_ref[...] * (1.0 / n_valid)              # (1, 1) broadcast
        # fused = mean(g)*h1 + mean(1-g)*h2  ==  h2 + mean(g)*(h1 - h2)
        o_ref[...] = (h2 + g_mean * (h1 - h2)).astype(o_ref.dtype)


def gated_fusion(feature1, feature2, w1, w2, wg, *, tile_n=512):
    """feature1/feature2: (B, S, d_model) float32.
    w1, w2: (size_out, d_model)   (PyTorch Linear weight layout, no bias)
    wg:     (1, 2*size_out)
    Returns (B, S, size_out) float32.
    """
    B, S, D = feature1.shape
    size_out = w1.shape[0]
    N = B * S

    x1 = feature1.reshape(N, D)
    x2 = feature2.reshape(N, D)

    # Resident weights: transpose once; split wg into its two (1, size_out) rows.
    w1_t = w1.T                                 # (D, size_out)
    w2_t = w2.T                                 # (D, size_out)
    wg_rows = wg.reshape(2, size_out)           # row 0 -> h1 coeffs, row 1 -> h2

    # Row tiling: multiple of 8 sublanes; pad N up to a whole number of tiles.
    tile_n = min(tile_n, N)
    tile_n = max(8, (tile_n + 7) // 8 * 8)
    n_pad = (N + tile_n - 1) // tile_n * tile_n
    if n_pad != N:
        pad = n_pad - N
        x1 = jnp.pad(x1, ((0, pad), (0, 0)))
        x2 = jnp.pad(x2, ((0, pad), (0, 0)))
    num_tiles = n_pad // tile_n

    kernel = functools.partial(_gated_fusion_kernel,
                               tile_n=tile_n, n_valid=N, n_pad=n_pad)

    # x1/x2 double-buffered + output double-buffered + resident weights + scratch.
    vmem_bytes = 4 * (2 * 2 * tile_n * D
                      + 2 * 2 * tile_n * size_out
                      + 2 * D * size_out
                      + 2 * size_out + 1)
    vmem_bytes = int(min(max(2 * vmem_bytes, 16 << 20), 48 << 20))

    out = pl.pallas_call(
        kernel,
        out_shape=jax.ShapeDtypeStruct((n_pad, size_out), jnp.float32),
        grid_spec=pltpu.PrefetchScalarGridSpec(
            num_scalar_prefetch=0,
            grid=(2, num_tiles),                    # (pass, row tile), sequential
            in_specs=[
                pl.BlockSpec((tile_n, D), lambda p, i: (i, 0)),     # x1 stream
                pl.BlockSpec((tile_n, D), lambda p, i: (i, 0)),     # x2 stream
                pl.BlockSpec((D, size_out), lambda p, i: (0, 0)),   # W1^T resident
                pl.BlockSpec((D, size_out), lambda p, i: (0, 0)),   # W2^T resident
                pl.BlockSpec((2, size_out), lambda p, i: (0, 0)),   # Wg rows
            ],
            # Pass 0 pins the output window to block 0 (nothing written there);
            # pass 1 visits and fully overwrites every row tile.
            out_specs=pl.BlockSpec((tile_n, size_out), lambda p, i: (i * p, 0)),
            scratch_shapes=[pltpu.VMEM((1, 1), jnp.float32)],       # global gate sum
        ),
        compiler_params=pltpu.CompilerParams(
            # Row tiles feed a shared cross-tile accumulator in pass 0 and pass 1
            # depends on pass 0, so both axes are sequential ("arbitrary").
            dimension_semantics=("arbitrary", "arbitrary"),
            vmem_limit_bytes=vmem_bytes,
        ),
    )(x1, x2, w1_t, w2_t, wg_rows)

    return out[:N].reshape(B, S, size_out)


def _reference(feature1, feature2, w1, w2, wg):
    h1 = jnp.tanh(feature1 @ w1.T)
    h2 = jnp.tanh(feature2 @ w2.T)
    combined = jnp.concatenate([h1, h2], axis=2)
    gate = jax.nn.sigmoid(combined @ wg.T)
    return jnp.mean(gate) * h1 + jnp.mean(1.0 - gate) * h2


if __name__ == "__main__":
    B, S, d_model, size_out = 2, 8, 32, 16

    key = jax.random.PRNGKey(0)
    k1, k2, kw1, kw2, kwg = jax.random.split(key, 5)

    feature1 = jax.random.normal(k1, (B, S, d_model), dtype=jnp.float32)
    feature2 = jax.random.normal(k2, (B, S, d_model), dtype=jnp.float32)

    # Deterministic "Kaiming-uniform-ish" init, same shapes as nn.Linear weights.
    w1 = jax.random.uniform(kw1, (size_out, d_model), dtype=jnp.float32,
                            minval=-1.0, maxval=1.0) / jnp.sqrt(d_model)
    w2 = jax.random.uniform(kw2, (size_out, d_model), dtype=jnp.float32,
                            minval=-1.0, maxval=1.0) / jnp.sqrt(d_model)
    wg = jax.random.uniform(kwg, (1, 2 * size_out), dtype=jnp.float32,
                            minval=-1.0, maxval=1.0) / jnp.sqrt(2 * size_out)

    ref = _reference(feature1, feature2, w1, w2, wg)

    # 1) default tiling (single tile for these small shapes)
    out = jax.block_until_ready(gated_fusion(feature1, feature2, w1, w2, wg))
    assert out.shape == (B, S, size_out)
    assert jnp.allclose(out, ref, atol=3e-5, rtol=1e-5)

    # 2) multi-tile path (exercises the cross-tile gate-sum accumulator)
    out_mt = jax.block_until_ready(
        gated_fusion(feature1, feature2, w1, w2, wg, tile_n=8))
    assert jnp.allclose(out_mt, ref, atol=3e-5, rtol=1e-5)

    # 3) padded/masked path (N = B*S not a multiple of the tile)
    f1s, f2s = feature1[:, :5, :], feature2[:, :5, :]
    out_pad = jax.block_until_ready(gated_fusion(f1s, f2s, w1, w2, wg))
    ref_pad = _reference(f1s, f2s, w1, w2, wg)
    assert jnp.allclose(out_pad, ref_pad, atol=3e-5, rtol=1e-5)

    print("KERNEL_OK")
</pallas_src>

<mosaic_0001>
module attributes {stable_mosaic.version = 11 : i64} {
  func.func @_gated_fusion_kernel(%arg0: i32, %arg1: i32, %arg2: memref<16x32xf32, #tpu.memory_space<vmem>>, %arg3: memref<16x32xf32, #tpu.memory_space<vmem>>, %arg4: memref<32x16xf32, #tpu.memory_space<vmem>>, %arg5: memref<32x16xf32, #tpu.memory_space<vmem>>, %arg6: memref<2x16xf32, #tpu.memory_space<vmem>>, %arg7: memref<16x16xf32, #tpu.memory_space<vmem>>, %arg8: memref<1x1xf32, #tpu.memory_space<vmem>>) attributes {dimension_semantics = [#tpu.dimension_semantics<arbitrary>, #tpu.dimension_semantics<arbitrary>], iteration_bounds = array<i64: 2, 1>, scalar_prefetch = 0 : i64, scratch_operands = 1 : i64, tpu.core_type = #tpu.core_type<tc>, window_params = [{transform_indices = @transform_0, window_bounds = array<i64: 16, 32>}, {transform_indices = @transform_1, window_bounds = array<i64: 16, 32>}, {pipeline_mode = #tpu.pipeline_mode<synchronous>, transform_indices = @transform_2, window_bounds = array<i64: 32, 16>}, {pipeline_mode = #tpu.pipeline_mode<synchronous>, transform_indices = @transform_3, window_bounds = array<i64: 32, 16>}, {pipeline_mode = #tpu.pipeline_mode<synchronous>, transform_indices = @transform_4, window_bounds = array<i64: 2, 16>}, {transform_indices = @transform_5, window_bounds = array<i64: 16, 16>}]} {
    %c0_i32 = arith.constant 0 : i32
    %0 = arith.cmpi eq, %arg0, %c0_i32 : i32
    %c0_i32_0 = arith.constant 0 : i32
    %1 = arith.cmpi eq, %arg1, %c0_i32_0 : i32
    %2 = arith.andi %0, %1 : i1
    %3 = arith.extui %2 : i1 to i32
    %c0_i32_1 = arith.constant 0 : i32
    %4 = arith.cmpi ne, %3, %c0_i32_1 : i32
    scf.if %4 {
      %cst_13 = arith.constant 0.000000e+00 : f32
      %19 = vector.broadcast %cst_13 : f32 to vector<1x1xf32>
      %c0_14 = arith.constant 0 : index
      %c0_15 = arith.constant 0 : index
      %20 = vector.load %arg8[%c0_14, %c0_15] : memref<1x1xf32, #tpu.memory_space<vmem>>, vector<1x1xf32>
      tpu.vector_store %arg8[%c0_14, %c0_15], %19 {strides = array<i32>} : memref<1x1xf32, #tpu.memory_space<vmem>>, vector<1x1xf32>,
    } else {
    }
    %c0 = arith.constant 0 : index
    %c0_2 = arith.constant 0 : index
    %5 = vector.load %arg2[%c0, %c0_2] : memref<16x32xf32, #tpu.memory_space<vmem>>, vector<16x32xf32>
    %c0_3 = arith.constant 0 : index
    %c0_4 = arith.constant 0 : index
    %6 = vector.load %arg4[%c0_3, %c0_4] : memref<32x16xf32, #tpu.memory_space<vmem>>, vector<32x16xf32>
    %cst = arith.constant dense<0.000000e+00> : vector<16x16xf32>
    %7 = tpu.matmul %5, %6, %cst {dimension_numbers = #tpu.dot_dimension_numbers<[1], [0], [0], [1], [0, 0, 1, 1], [], []>} : vector<16x32xf32>, vector<32x16xf32>, vector<16x16xf32> -> vector<16x16xf32>
    %8 = math.tanh %7 : vector<16x16xf32>
    %c0_5 = arith.constant 0 : index
    %c0_6 = arith.constant 0 : index
    %9 = vector.load %arg3[%c0_5, %c0_6] : memref<16x32xf32, #tpu.memory_space<vmem>>, vector<16x32xf32>
    %c0_7 = arith.constant 0 : index
    %c0_8 = arith.constant 0 : index
    %10 = vector.load %arg5[%c0_7, %c0_8] : memref<32x16xf32, #tpu.memory_space<vmem>>, vector<32x16xf32>
    %cst_9 = arith.constant dense<0.000000e+00> : vector<16x16xf32>
    %11 = tpu.matmul %9, %10, %cst_9 {dimension_numbers = #tpu.dot_dimension_numbers<[1], [0], [0], [1], [0, 0, 1, 1], [], []>} : vector<16x32xf32>, vector<32x16xf32>, vector<16x16xf32> -> vector<16x16xf32>
    %12 = math.tanh %11 : vector<16x16xf32>
    %c0_i32_10 = arith.constant 0 : i32
    %13 = arith.cmpi eq, %arg0, %c0_i32_10 : i32
    %14 = arith.extui %13 : i1 to i32
    %c0_i32_11 = arith.constant 0 : i32
    %15 = arith.cmpi ne, %14, %c0_i32_11 : i32
    scf.if %15 {
      %c0_13 = arith.constant 0 : index
      %c0_14 = arith.constant 0 : index
      %19 = vector.load %arg6[%c0_13, %c0_14] : memref<2x16xf32, #tpu.memory_space<vmem>>, vector<1x16xf32>
      %c1 = arith.constant 1 : index
      %c0_15 = arith.constant 0 : index
      %20 = vector.load %arg6[%c1, %c0_15] : memref<2x16xf32, #tpu.memory_space<vmem>>, vector<1x16xf32>
      %21 = vector.broadcast %19 : vector<1x16xf32> to vector<16x16xf32>
      %22 = arith.mulf %8, %21 : vector<16x16xf32>
      %23 = vector.broadcast %20 : vector<1x16xf32> to vector<16x16xf32>
      %24 = arith.mulf %12, %23 : vector<16x16xf32>
      %25 = arith.addf %22, %24 : vector<16x16xf32>
      %cst_16 = arith.constant dense<0.000000e+00> : vector<16xf32>
      %26 = vector.multi_reduction <add>, %25, %cst_16 [1] : vector<16x16xf32> to vector<16xf32>
      %27 = vector.shape_cast %26 : vector<16xf32> to vector<16x1xf32>
      %28 = arith.negf %27 : vector<16x1xf32>
      %29 = math.exp %28 : vector<16x1xf32>
      %cst_17 = arith.constant 1.000000e+00 : f32
      %30 = vector.broadcast %cst_17 : f32 to vector<16x1xf32>
      %31 = arith.addf %30, %29 : vector<16x1xf32>
      %32 = arith.divf %30, %31 : vector<16x1xf32>
      %c0_18 = arith.constant 0 : index
      %c0_19 = arith.constant 0 : index
      %33 = vector.load %arg8[%c0_18, %c0_19] : memref<1x1xf32, #tpu.memory_space<vmem>>, vector<1x1xf32>
      %34 = vector.shape_cast %32 : vector<16x1xf32> to vector<1x16x1xf32>
      %cst_20 = arith.constant dense<0.000000e+00> : vector<1xf32>
      %35 = vector.multi_reduction <add>, %34, %cst_20 [1, 2] : vector<1x16x1xf32> to vector<1xf32>
      %36 = vector.shape_cast %35 : vector<1xf32> to vector<1x1x1xf32>
      %37 = vector.extract %36[0, 0, 0] : f32 from vector<1x1x1xf32>
      %38 = vector.broadcast %37 : f32 to vector<1x1xf32>
      %39 = arith.addf %33, %38 : vector<1x1xf32>
      %c0_21 = arith.constant 0 : index
      %c0_22 = arith.constant 0 : index
      %40 = vector.load %arg8[%c0_21, %c0_22] : memref<1x1xf32, #tpu.memory_space<vmem>>, vector<1x1xf32>
      tpu.vector_store %arg8[%c0_21, %c0_22], %39 {strides = array<i32>} : memref<1x1xf32, #tpu.memory_space<vmem>>, vector<1x1xf32>,
    } else {
    }
    %c1_i32 = arith.constant 1 : i32
    %16 = arith.cmpi eq, %arg0, %c1_i32 : i32
    %17 = arith.extui %16 : i1 to i32
    %c0_i32_12 = arith.constant 0 : i32
    %18 = arith.cmpi ne, %17, %c0_i32_12 : i32
    scf.if %18 {
      %c0_13 = arith.constant 0 : index
      %c0_14 = arith.constant 0 : index
      %19 = vector.load %arg8[%c0_13, %c0_14] : memref<1x1xf32, #tpu.memory_space<vmem>>, vector<1x1xf32>
      %cst_15 = arith.constant 6.250000e-02 : f32
      %20 = vector.broadcast %cst_15 : f32 to vector<1x1xf32>
      %21 = arith.mulf %19, %20 : vector<1x1xf32>
      %22 = arith.subf %8, %12 : vector<16x16xf32>
      %23 = vector.broadcast %21 : vector<1x1xf32> to vector<16x16xf32>
      %24 = arith.mulf %23, %22 : vector<16x16xf32>
      %25 = arith.addf %12, %24 : vector<16x16xf32>
      %c0_16 = arith.constant 0 : index
      %c0_17 = arith.constant 0 : index
      %26 = vector.load %arg7[%c0_16, %c0_17] : memref<16x16xf32, #tpu.memory_space<vmem>>, vector<16x16xf32>
      tpu.vector_store %arg7[%c0_16, %c0_17], %25 {strides = array<i32>} : memref<16x16xf32, #tpu.memory_space<vmem>>, vector<16x16xf32>,
    } else {
    }
    return
  }
  func.func @transform_0(%arg0: i32, %arg1: i32) -> (i32, i32) {
    %c0_i32 = arith.constant 0 : i32
    %c0_i32_0 = arith.constant 0 : i32
    return %arg1, %c0_i32 : i32, i32
  }
  func.func @transform_1(%arg0: i32, %arg1: i32) -> (i32, i32) {
    %c0_i32 = arith.constant 0 : i32
    %c0_i32_0 = arith.constant 0 : i32
    return %arg1, %c0_i32 : i32, i32
  }
  func.func @transform_2(%arg0: i32, %arg1: i32) -> (i32, i32) {
    %c0_i32 = arith.constant 0 : i32
    %c0_i32_0 = arith.constant 0 : i32
    %c0_i32_1 = arith.constant 0 : i32
    return %c0_i32, %c0_i32_0 : i32, i32
  }
  func.func @transform_3(%arg0: i32, %arg1: i32) -> (i32, i32) {
    %c0_i32 = arith.constant 0 : i32
    %c0_i32_0 = arith.constant 0 : i32
    %c0_i32_1 = arith.constant 0 : i32
    return %c0_i32, %c0_i32_0 : i32, i32
  }
  func.func @transform_4(%arg0: i32, %arg1: i32) -> (i32, i32) {
    %c0_i32 = arith.constant 0 : i32
    %c0_i32_0 = arith.constant 0 : i32
    %c0_i32_1 = arith.constant 0 : i32
    return %c0_i32, %c0_i32_0 : i32, i32
  }
  func.func @transform_5(%arg0: i32, %arg1: i32) -> (i32, i32) {
    %0 = arith.muli %arg1, %arg0 : i32
    %c0_i32 = arith.constant 0 : i32
    %c0_i32_0 = arith.constant 0 : i32
    return %0, %c0_i32 : i32, i32
  }
}

</mosaic_0001>

<llo_original>
// kernel: tpu_custom_call.1
$region0: #{tpu_custom_call.1}
  #allocation0 [shape = 'u32[]', space=smem, size = 0x4, offset = 0x4, fixed_abs, tag = 'smem constant byte address 0x4 - core index']
  #allocation1 [shape = 'u32[72,128]{1,0:T(1,128)}', space=vmem, size = 0x9000, scoped, tag = 'internal scratch']
  #allocation2 [shape = 'f32[1,1]{1,0:T(1,128)}', space=vmem, size = 0x200, scoped, tag = 'scratch operand']
  %s0 = inlined_call_operand.vmem [shape: f32[16,32], index: 0, kind: input, shape index: {}]
  %s1 = inlined_call_operand.vmem [shape: f32[16,32], index: 1, kind: input, shape index: {}]
  %s2 = inlined_call_operand.vmem [shape: f32[32,16], index: 2, kind: input, shape index: {}]
  %s3 = inlined_call_operand.vmem [shape: f32[32,16], index: 3, kind: input, shape index: {}]
  %s4 = inlined_call_operand.vmem [shape: f32[2,16], index: 4, kind: input, shape index: {}]
  %s5 = inlined_call_operand.hbm [shape: f32[16,16], index: 5, kind: output, shape index: {}]
  %s6 = sld [smem:[#allocation0]]
  $region65: #{tpu_custom_call.1} parent=0
    _
  %s8 = ssub.s32 1, %s6
  %s9 = scalar_select 0, %s8, %s6
  $region1: #{tpu_custom_call.1} parent=0
    #allocation3 [shape = 'u8[16384]{0}', space=vmem, size = 0x4000, scoped, tag = 'output window, operand 0']
    #allocation4 [shape = 's32[2]{0}', space=sflag, size = 0x8, scoped, tag = 'scoped memory for tpu_custom_call.1']
    %10 = vsyncpa [#allocation4], 0
    %s11 = scalar_lea.sflag [#allocation4], 1
    %12 = vsyncpa %s11, 0
    loop: start=0, step=1, limit=4
    $region2: #{tpu_custom_call.1} parent=1 // loop_pre_header
      _
    $region3: #{tpu_custom_call.1} parent=1 // loop_header
      %s14 = sphi 0, %s18
      %p15 = scmp.ge.s32.totalorder %s14, 4
      %s21 = sphi 0, %s33
      %s22 = sphi 0, %s29
      %s23 = sphi 0, %s21
      %s24 = sphi 0, %s22
      %s25 = sphi 0, %s23
      %s26 = sphi 0, %s24
      %s36 = sphi 0, %s38
      %s39 = sphi 0, %s36
      %s40 = sphi 0, %s39
      %s56 = sphi 0, %s40
      %s62 = sphi 0, %s64
      %s65 = sphi 0, %s62
      %s66 = sphi 0, %s65
      %s82 = sphi 0, %s66
      %s86 = sphi 0, %s86
      %s88 = sphi 0, %s86
      %s89 = sphi 0, %s88
      %s103 = sphi 0, %s89
      %s107 = sphi 0, %s107
      %s109 = sphi 0, %s107
      %s110 = sphi 0, %s109
      %s124 = sphi 0, %s110
      %s128 = sphi 0, %s128
      %s130 = sphi 0, %s128
      %s131 = sphi 0, %s130
      %s145 = sphi 0, %s131
      %s153 = sphi 0, %s155
      %s156 = sphi 0, %s153
      %s157 = sphi 0, %s156
      %s173 = sphi 0, %s157
    $region4: #{tpu_custom_call.1} parent=1 // loop_header_branch
      %17 = sbr.rel (%p15) target = $region8
    $region5: #{tpu_custom_call.1} parent=1 // loop_body
      %s19 = ssub.s32 %s14, 1
      %s20 = ssub.s32 %s14, 2
      %s27 = sadd.s32 1, %s22
      %p28 = scmp.ge.s32.totalorder %s27, 1
      %s29 = scalar_select %p28, 0, %s27
      %s30 = sadd.s32 1, %s21
      %s31 = scalar_select %p28, %s30, %s21
      %p32 = scmp.ge.s32.totalorder %s31, 2
      %s33 = scalar_select %p32, 0, %s31
      %s34 = ssub.s32 %s22, %s29
      %p35 = scmp.eq.s32.totalorder %s34, 0
      %s37 = sadd.s32 %s36, 1
      %s38 = scalar_select %p35, %s36, %s37
      %p41 = pneg %p35
      %p42 = scmp.eq.s32.totalorder %s14, 1
      %p43 = por %p41, %p42
      %p44 = scmp.ne.s32.totalorder %s36, %s39
      %p45 = scmp.eq.s32.totalorder %s14, 0
      %p46 = por %p44, %p45
      %p47 = scmp.ne.s32.totalorder %s36, %s39
      %p48 = scmp.eq.s32.totalorder %s19, 1
      %p49 = por %p47, %p48
      %p50 = scmp.ne.s32.totalorder %s39, %s40
      %p51 = scmp.eq.s32.totalorder %s19, 0
      %p52 = por %p50, %p51
      %p53 = scmp.ne.s32.totalorder %s39, %s40
      %p54 = scmp.eq.s32.totalorder %s20, 1
      %p55 = por %p53, %p54
      %p57 = scmp.ne.s32.totalorder %s40, %s56
      %p58 = scmp.eq.s32.totalorder %s20, 0
      %p59 = por %p57, %p58
      %s60 = ssub.s32 %s22, %s29
      %p61 = scmp.eq.s32.totalorder %s60, 0
      %s63 = sadd.s32 %s62, 1
      %s64 = scalar_select %p61, %s62, %s63
      %p67 = pneg %p61
      %p68 = scmp.eq.s32.totalorder %s14, 1
      %p69 = por %p67, %p68
      %p70 = scmp.ne.s32.totalorder %s62, %s65
      %p71 = scmp.eq.s32.totalorder %s14, 0
      %p72 = por %p70, %p71
      %p73 = scmp.ne.s32.totalorder %s62, %s65
      %p74 = scmp.eq.s32.totalorder %s19, 1
      %p75 = por %p73, %p74
      %p76 = scmp.ne.s32.totalorder %s65, %s66
      %p77 = scmp.eq.s32.totalorder %s19, 0
      %p78 = por %p76, %p77
      %p79 = scmp.ne.s32.totalorder %s65, %s66
      %p80 = scmp.eq.s32.totalorder %s20, 1
      %p81 = por %p79, %p80
      %p83 = scmp.ne.s32.totalorder %s66, %s82
      %p84 = scmp.eq.s32.totalorder %s20, 0
      %p85 = por %p83, %p84
      %s87 = sadd.s32 %s86, 1
      %p90 = scmp.eq.s32.totalorder %s14, 1
      %p91 = scmp.ne.s32.totalorder %s86, %s88
      %p92 = scmp.eq.s32.totalorder %s14, 0
      %p93 = por %p91, %p92
      %p94 = scmp.ne.s32.totalorder %s86, %s88
      %p95 = scmp.eq.s32.totalorder %s19, 1
      %p96 = por %p94, %p95
      %p97 = scmp.ne.s32.totalorder %s88, %s89
      %p98 = scmp.eq.s32.totalorder %s19, 0
      %p99 = por %p97, %p98
      %p100 = scmp.ne.s32.totalorder %s88, %s89
      %p101 = scmp.eq.s32.totalorder %s20, 1
      %p102 = por %p100, %p101
      %p104 = scmp.ne.s32.totalorder %s89, %s103
      %p105 = scmp.eq.s32.totalorder %s20, 0
      %p106 = por %p104, %p105
      %s108 = sadd.s32 %s107, 1
      %p111 = scmp.eq.s32.totalorder %s14, 1
      %p112 = scmp.ne.s32.totalorder %s107, %s109
      %p113 = scmp.eq.s32.totalorder %s14, 0
      %p114 = por %p112, %p113
      %p115 = scmp.ne.s32.totalorder %s107, %s109
      %p116 = scmp.eq.s32.totalorder %s19, 1
      %p117 = por %p115, %p116
      %p118 = scmp.ne.s32.totalorder %s109, %s110
      %p119 = scmp.eq.s32.totalorder %s19, 0
      %p120 = por %p118, %p119
      %p121 = scmp.ne.s32.totalorder %s109, %s110
      %p122 = scmp.eq.s32.totalorder %s20, 1
      %p123 = por %p121, %p122
      %p125 = scmp.ne.s32.totalorder %s110, %s124
      %p126 = scmp.eq.s32.totalorder %s20, 0
      %p127 = por %p125, %p126
      %s129 = sadd.s32 %s128, 1
      %p132 = scmp.eq.s32.totalorder %s14, 1
      %p133 = scmp.ne.s32.totalorder %s128, %s130
      %p134 = scmp.eq.s32.totalorder %s14, 0
      %p135 = por %p133, %p134
      %p136 = scmp.ne.s32.totalorder %s128, %s130
      %p137 = scmp.eq.s32.totalorder %s19, 1
      %p138 = por %p136, %p137
      %p139 = scmp.ne.s32.totalorder %s130, %s131
      %p140 = scmp.eq.s32.totalorder %s19, 0
      %p141 = por %p139, %p140
      %p142 = scmp.ne.s32.totalorder %s130, %s131
      %p143 = scmp.eq.s32.totalorder %s20, 1
      %p144 = por %p142, %p143
      %p146 = scmp.ne.s32.totalorder %s131, %s145
      %p147 = scmp.eq.s32.totalorder %s20, 0
      %p148 = por %p146, %p147
      %s149 = smul.u32 %s22, %s21
      %s150 = smul.u32 %s29, %s33
      %s151 = ssub.s32 %s149, %s150
      %p152 = scmp.eq.s32.totalorder %s151, 0
      %s154 = sadd.s32 %s153, 1
      %s155 = scalar_select %p152, %s153, %s154
      %p158 = pneg %p152
      %p159 = scmp.eq.s32.totalorder %s14, 1
      %p160 = por %p158, %p159
      %p161 = scmp.ne.s32.totalorder %s153, %s156
      %p162 = scmp.eq.s32.totalorder %s14, 0
      %p163 = por %p161, %p162
      %p164 = scmp.ne.s32.totalorder %s153, %s156
      %p165 = scmp.eq.s32.totalorder %s19, 1
      %p166 = por %p164, %p165
      %p167 = scmp.ne.s32.totalorder %s156, %s157
      %p168 = scmp.eq.s32.totalorder %s19, 0
      %p169 = por %p167, %p168
      %p170 = scmp.ne.s32.totalorder %s156, %s157
      %p171 = scmp.eq.s32.totalorder %s20, 1
      %p172 = por %p170, %p171
      %p174 = scmp.ne.s32.totalorder %s157, %s173
      %p175 = scmp.eq.s32.totalorder %s20, 0
      %p176 = por %p174, %p175
      %p177 = scmp.le.s32.totalorder 1, %s14
      %p178 = scmp.lt.s32.totalorder %s14, 3
      %p179 = pnand %p177, %p178
      %p180 = pneg %p179
      // Predicated region
      $region9: #{tpu_custom_call.1} parent=5 // pred_check
        _
      $region10: #{tpu_custom_call.1} parent=5 // pred_check_branch
        %182 = sbr.rel (%p179) target = $region12
      $region11: #{tpu_custom_call.1} parent=5 // pred_region
        %s183 = ssub.s32 %s14, 1
        // Predicated region
        $region13: #{tpu_custom_call.1} parent=11 // pred_check
          %p184 = pneg %p52
        $region14: #{tpu_custom_call.1} parent=11 // pred_check_branch
          %186 = sbr.rel (%p184) target = $region16
        $region15: #{tpu_custom_call.1} parent=11 // pred_region
          %s187 = smul.u32 2, %s24
          %p188 = scmp.lt.s32.totalorder %s187, 1
          %s189 = scalar_select %p188, %s187, 1
          %s190 = smul.addr %s189, 8
          %s191 = scalar_lea.vmem %s0, %s190
          %s192 = smul.u32 2, %s24
        $region16: #{tpu_custom_call.1} parent=11 // pred_fallthru
          _
        // Predicated region
        $region17: #{tpu_custom_call.1} parent=11 // pred_check
          %p193 = pneg %p78
        $region18: #{tpu_custom_call.1} parent=11 // pred_check_branch
          %195 = sbr.rel (%p193) target = $region20
        $region19: #{tpu_custom_call.1} parent=11 // pred_region
          %s196 = smul.u32 2, %s24
          %p197 = scmp.lt.s32.totalorder %s196, 1
          %s198 = scalar_select %p197, %s196, 1
          %s199 = smul.addr %s198, 8
          %s200 = scalar_lea.vmem %s1, %s199
          %s201 = smul.u32 2, %s24
        $region20: #{tpu_custom_call.1} parent=11 // pred_fallthru
          _
        // Predicated region
        $region21: #{tpu_custom_call.1} parent=11 // pred_check
          %p202 = pneg %p99
        $region22: #{tpu_custom_call.1} parent=11 // pred_check_branch
          %204 = sbr.rel (%p202) target = $region24
        $region23: #{tpu_custom_call.1} parent=11 // pred_region
          _
        $region24: #{tpu_custom_call.1} parent=11 // pred_fallthru
          _
        // Predicated region
        $region25: #{tpu_custom_call.1} parent=11 // pred_check
          %p205 = pneg %p120
        $region26: #{tpu_custom_call.1} parent=11 // pred_check_branch
          %207 = sbr.rel (%p205) target = $region28
        $region27: #{tpu_custom_call.1} parent=11 // pred_region
          _
        $region28: #{tpu_custom_call.1} parent=11 // pred_fallthru
          _
        // Predicated region
        $region29: #{tpu_custom_call.1} parent=11 // pred_check
          %p208 = pneg %p141
        $region30: #{tpu_custom_call.1} parent=11 // pred_check_branch
          %210 = sbr.rel (%p208) target = $region32
        $region31: #{tpu_custom_call.1} parent=11 // pred_region
          _
        $region32: #{tpu_custom_call.1} parent=11 // pred_fallthru
          _
      $region12: #{tpu_custom_call.1} parent=5 // pred_fallthru
        _
      %p211 = scmp.lt.s32.totalorder %s14, 2
      // Predicated region
      $region33: #{tpu_custom_call.1} parent=5 // pred_check
        %p212 = pneg %p211
      $region34: #{tpu_custom_call.1} parent=5 // pred_check_branch
        %214 = sbr.rel (%p212) target = $region36
      $region35: #{tpu_custom_call.1} parent=5 // pred_region
        _
      $region36: #{tpu_custom_call.1} parent=5 // pred_fallthru
        _
      %p215 = scmp.le.s32.totalorder 1, %s14
      %p216 = scmp.lt.s32.totalorder %s14, 3
      %p217 = pnand %p215, %p216
      %p218 = pneg %p217
      // Predicated region
      $region37: #{tpu_custom_call.1} parent=5 // pred_check
        _
      $region38: #{tpu_custom_call.1} parent=5 // pred_check_branch
        %220 = sbr.rel (%p217) target = $region40
      $region39: #{tpu_custom_call.1} parent=5 // pred_region
        %s221 = ssub.s32 %s14, 1
        %s222 = smul.u32 2, %s24
        %p223 = scmp.lt.s32.totalorder %s222, 1
        %s224 = scalar_select %p223, %s222, 1
        %s225 = smul.addr %s224, 8
        %s226 = scalar_lea.vmem %s0, %s225
        %p227 = pneg %p52
        %p228 = pneg %p49
        %s229 = smul.u32 2, %s24
        %p230 = scmp.lt.s32.totalorder %s229, 1
        %s231 = scalar_select %p230, %s229, 1
        %s232 = smul.addr %s231, 8
        %s233 = scalar_lea.vmem %s1, %s232
        %p234 = pneg %p78
        %p235 = pneg %p75
        %p236 = pneg %p99
        %p237 = pneg %p96
        %p238 = pneg %p120
        %p239 = pneg %p117
        %p240 = pneg %p141
        %p241 = pneg %p138
        %p242 = pneg %p169
        %p243 = pneg %p166
        %s244 = sand.u32 %s156, 1
        %s245 = scalar_lea.sflag [#allocation4], %s244
        %s246 = sand.u32 %s156, 1
        %s247 = smul.addr %s246, 16
        %s248 = scalar_lea.vmem [#allocation3], %s247
        %s249 = smul.u32 2, %s24
        %p250 = scmp.lt.s32.totalorder %s249, 1
        %s251 = scalar_select %p250, %s249, 1
        %s252 = smul.addr %s251, 8
        %s253 = scalar_lea.vmem %s0, %s252
        %s254 = smul.u32 2, %s24
        %s255 = smul.u32 2, %s24
        %p256 = scmp.lt.s32.totalorder %s255, 1
        %s257 = scalar_select %p256, %s255, 1
        %s258 = smul.addr %s257, 8
        %s259 = scalar_lea.vmem %s1, %s258
        %s260 = smul.u32 2, %s24
        %s261 = smul.u32 %s24, %s23
        %s262 = smul.u32 2, %s261
        %p263 = scmp.eq.s32.totalorder %s23, 0
        %p264 = scmp.eq.s32.totalorder %s24, 0
        %p265 = pnand %p263, %p264
        %p266 = pneg %p265
        // Predicated region
        $region41: #{tpu_custom_call.1} parent=39 // pred_check
          _
        $region42: #{tpu_custom_call.1} parent=39 // pred_check_branch
          %268 = sbr.rel (%p265) target = $region44
        $region43: #{tpu_custom_call.1} parent=39 // pred_region
          %vm269 = vcmask 0
          %270 = vst.msk [vmem:[#allocation2] sm:$0x1] %vm269, 0.0
        $region44: #{tpu_custom_call.1} parent=39 // pred_fallthru
          _
        %v271 = vld [vmem:[%s253] sm:$0xff]
        %v272 = vld [vmem:[%s253 + $0x8] sm:$0xff]
        %v273 = vld [vmem:[%s2] sm:$0xff]
        %v274 = vld [vmem:[%s2 + $0x8] sm:$0xff]
        %v275 = vld [vmem:[%s2 + $0x10] sm:$0xff]
        %v276 = vld [vmem:[%s2 + $0x18] sm:$0xff]
        %vm277 = vcmask 261120
        %v279 = vsel %vm277, %v271, 0
        %v282 = vsel %vm277, %v272, 0
        %284 = vmatpush.msra.mxu0 0.0
        %285 = vmatpush.msra.mxu0 0.0
        %286 = vmatpush.msra.mxu0 0.0
        %287 = vmatpush.msra.mxu0 0.0
        %288 = vmatpush.msra.mxu0 0.0
        %289 = vmatpush.msra.mxu0 0.0
        %290 = vmatpush.msra.mxu0 0.0
        %291 = vmatpush.msra.mxu0 0.0
        %292 = vmatpush.msra.mxu0 0.0
        %293 = vmatpush.msra.mxu0 0.0
        %294 = vmatpush.msra.mxu0 0.0
        %295 = vmatpush.msra.mxu0 0.0
        %296 = vmatpush.msra.mxu0 %v276
        %297 = vmatpush.msra.mxu0 %v275
        %298 = vmatpush.msra.mxu0 %v274
        %299 = vmatpush.msra.mxu0 %v273
        %300 = vmatmul.f32.gmra.mxu0 %v279
        %v301 = vpop.f32.mrf.mxu0
        %v302 = vadd.f32 0.0, %v301
        %303 = vmatmul.f32.gmra.mxu0 %v282
        %v304 = vpop.f32.mrf.mxu0
        %v305 = vadd.f32 0.0, %v304
        %306 = vdwg.mxu0
        %v307 = vtanh.pop %v302
        %v308 = vtanh.pop %v305
        %v309 = vld [vmem:[%s259] sm:$0xff]
        %v310 = vld [vmem:[%s259 + $0x8] sm:$0xff]
        %v311 = vld [vmem:[%s3] sm:$0xff]
        %v312 = vld [vmem:[%s3 + $0x8] sm:$0xff]
        %v313 = vld [vmem:[%s3 + $0x10] sm:$0xff]
        %v314 = vld [vmem:[%s3 + $0x18] sm:$0xff]
        %v316 = vsel %vm277, %v309, 0
        %v319 = vsel %vm277, %v310, 0
        %321 = vmatpush.msra.mxu0 0.0
        %322 = vmatpush.msra.mxu0 0.0
        %323 = vmatpush.msra.mxu0 0.0
        %324 = vmatpush.msra.mxu0 0.0
        %325 = vmatpush.msra.mxu0 0.0
        %326 = vmatpush.msra.mxu0 0.0
        %327 = vmatpush.msra.mxu0 0.0
        %328 = vmatpush.msra.mxu0 0.0
        %329 = vmatpush.msra.mxu0 0.0
        %330 = vmatpush.msra.mxu0 0.0
        %331 = vmatpush.msra.mxu0 0.0
        %332 = vmatpush.msra.mxu0 0.0
        %333 = vmatpush.msra.mxu0 %v314
        %334 = vmatpush.msra.mxu0 %v313
        %335 = vmatpush.msra.mxu0 %v312
        %336 = vmatpush.msra.mxu0 %v311
        %337 = vmatmul.f32.gmra.mxu0 %v316
        %v338 = vpop.f32.mrf.mxu0
        %v339 = vadd.f32 0.0, %v338
        %340 = vmatmul.f32.gmra.mxu0 %v319
        %v341 = vpop.f32.mrf.mxu0
        %v342 = vadd.f32 0.0, %v341
        %343 = vdwg.mxu0
        %v344 = vtanh.pop %v339
        %v345 = vtanh.pop %v342
        // Predicated region
        $region45: #{tpu_custom_call.1} parent=39 // pred_check
          %p346 = pneg %p263
        $region46: #{tpu_custom_call.1} parent=39 // pred_check_branch
          %348 = sbr.rel (%p346) target = $region48
        $region47: #{tpu_custom_call.1} parent=39 // pred_region
          %v349 = vld [vmem:[%s4] sm:$0x1]
          %v350 = vld [vmem:[%s4 + $0x1] sm:$0x1]
          %v351 = vperm.slane %v349, 0
          %v352 = vmul.f32 %v307, %v351
          %v353 = vmul.f32 %v308, %v351
          %v354 = vperm.slane %v350, 0
          %v355 = vmul.f32 %v344, %v354
          %v356 = vmul.f32 %v345, %v354
          %v357 = vadd.f32 %v352, %v355
          %v358 = vadd.f32 %v353, %v356
          %vm359 = vcmask 130048
          %v360 = vsel %vm359, %v357, 0.0
          %361 = vadd.xlane.f32.xlu0 %v360
          %v362 = vpop.xlane.xlu0 %361
          %v363 = vsel %vm359, %v358, 0.0
          %364 = vadd.xlane.f32.xlu0 %v363
          %v365 = vpop.xlane.xlu0 %364
          %v366 = vxor.u32 %v362, 2147483648
          %v367 = vxor.u32 %v365, 2147483648
          %v368 = vmul.f32 %v366, 1.442695
          %v369 = vpow.pop %v368
          %v370 = vmul.f32 %v367, 1.442695
          %v371 = vpow.pop %v370
          %v372 = vadd.f32 %v369, 1.0
          %v373 = vadd.f32 %v371, 1.0
          %v374 = vrcp.pop %v372
          %v375 = vmul.f32 %v372, %v374
          %v376 = vsub.f32 1.0, %v375
          %v377 = vmul.f32 %v374, %v376
          %v378 = vadd.f32 %v374, %v377
          %vm379 = vweird.f32 %v372
          %vm380 = vweird.f32 %v374
          %vm381 = vmor %vm379, %vm380
          %v382 = vsel %vm381, %v374, %v378
          %v383 = vand.u32 2147483647, %v372
          %vm384 = vcmp.eq.f32.partialorder %v383, 8.507059e+37
          %v385 = vand.u32 %v372, 2147483648
          %v386 = vor.u32 1.1754944e-38, %v385
          %v387 = vsel %vm384, %v386, %v382
          %v388 = vmul.f32 1.0, %v387
          %v389 = vrcp.pop %v373
          %v390 = vmul.f32 %v373, %v389
          %v391 = vsub.f32 1.0, %v390
          %v392 = vmul.f32 %v389, %v391
          %v393 = vadd.f32 %v389, %v392
          %vm394 = vweird.f32 %v373
          %vm395 = vweird.f32 %v389
          %vm396 = vmor %vm394, %vm395
          %v397 = vsel %vm396, %v389, %v393
          %v398 = vand.u32 2147483647, %v373
          %vm399 = vcmp.eq.f32.partialorder %v398, 8.507059e+37
          %v400 = vand.u32 %v373, 2147483648
          %v401 = vor.u32 1.1754944e-38, %v400
          %v402 = vsel %vm399, %v401, %v397
          %v403 = vmul.f32 1.0, %v402
          %v404 = vld [vmem:[#allocation2] sm:$0x1]
          %vm405 = vcmask 7168
          %v406 = vsel %vm405, %v388, 0.0
          %v407 = vsel %vm405, %v403, 0.0
          %v408 = vadd.f32 %v406, %v407
          %409 = vadd.xlane.f32.xlu0 %v408
          %v410 = vpop.xlane.xlu0 %409
          %v411 = vrot.slane %v410, 4
          %v412 = vadd.f32 %v410, %v411
          %v413 = vrot.slane %v412, 2
          %v414 = vadd.f32 %v412, %v413
          %v415 = vrot.slane %v414, 1
          %v416 = vadd.f32 %v414, %v415
          %s417 = vtos %v416
          %v418 = vstv %s417
          %v419 = vadd.f32 %v404, %v418
          %vm420 = vcmask 0
          %421 = vst.msk [vmem:[#allocation2] sm:$0x1] %vm420, %v419
        $region48: #{tpu_custom_call.1} parent=39 // pred_fallthru
          _
        %p422 = scmp.eq.s32.totalorder %s23, 1
        // Predicated region
        $region49: #{tpu_custom_call.1} parent=39 // pred_check
          %p423 = pneg %p422
        $region50: #{tpu_custom_call.1} parent=39 // pred_check_branch
          %425 = sbr.rel (%p423) target = $region52
        $region51: #{tpu_custom_call.1} parent=39 // pred_region
          %v426 = vld [vmem:[#allocation2] sm:$0x1]
          %v427 = vmul.f32 %v426, 0.0625
          %v428 = vsub.f32 %v307, %v344
          %v429 = vsub.f32 %v308, %v345
          %v431 = vperm.slane %v427, 0
          %432 = vset.pattern.permute.xlu0 0
          %433 = vperm.xlu0 %432, %v431
          %v434 = vpop.permute.xlu0 %433
          %v436 = vmul.f32 %v434, %v428
          %v437 = vmul.f32 %v434, %v429
          %v438 = vadd.f32 %v344, %v436
          %v439 = vadd.f32 %v345, %v437
          %vm440 = vcmask 130048
          %441 = vst.msk [vmem:[%s248] sm:$0xff] %vm440, %v438
          %442 = vst.msk [vmem:[%s248 + $0x8] sm:$0xff] %vm440, %v439
        $region52: #{tpu_custom_call.1} parent=39 // pred_fallthru
          _
        %s443 = sand.u32 %s156, 1
        %s444 = scalar_lea.sflag [#allocation4], %s443
        %s445 = sand.u32 %s156, 1
        %s446 = smul.addr %s445, 16
        %s447 = scalar_lea.vmem [#allocation3], %s446
        // Predicated region
        $region53: #{tpu_custom_call.1} parent=39 // pred_check
          %p448 = pneg %p166
        $region54: #{tpu_custom_call.1} parent=39 // pred_check_branch
          %450 = sbr.rel (%p448) target = $region56
        $region55: #{tpu_custom_call.1} parent=39 // pred_region
          %s451 = smul.u32 %s24, %s23
          %s452 = smul.u32 2, %s451
          %454 = vsyncadd %s444, 0
          %s455 = smul.addr %s452, 8
          %s456 = scalar_lea.hbm %s5, %s455
          %s457 = sshll.u32 %s447, 4
          %s458 = int_to_ptr.vmem [resolvable:$true] %s457
          %s459 = sshll.u32 %s456, 4
          %s460 = int_to_ptr.hbm [resolvable:$true] %s459
          %465 = dma.vmem_to_hbm [thread:$0]  %s458, 256, %s460, %s444, 128, 128, 8
        $region56: #{tpu_custom_call.1} parent=39 // pred_fallthru
          _
      $region40: #{tpu_custom_call.1} parent=5 // pred_fallthru
        _
      %p466 = scmp.le.s32.totalorder 2, %s14
      // Predicated region
      $region57: #{tpu_custom_call.1} parent=5 // pred_check
        %p467 = pneg %p466
      $region58: #{tpu_custom_call.1} parent=5 // pred_check_branch
        %469 = sbr.rel (%p467) target = $region60
      $region59: #{tpu_custom_call.1} parent=5 // pred_region
        %s470 = ssub.s32 %s14, 2
        // Predicated region
        $region61: #{tpu_custom_call.1} parent=59 // pred_check
          %p471 = pneg %p172
        $region62: #{tpu_custom_call.1} parent=59 // pred_check_branch
          %473 = sbr.rel (%p471) target = $region64
        $region63: #{tpu_custom_call.1} parent=59 // pred_region
          %s474 = sand.u32 %s157, 1
          %s475 = scalar_lea.sflag [#allocation4], %s474
          %s476 = sand.u32 %s157, 1
          %s477 = smul.addr %s476, 16
          %s478 = scalar_lea.vmem [#allocation3], %s477
          %480 = dma.done %s475, 256
        $region64: #{tpu_custom_call.1} parent=59 // pred_fallthru
          _
      $region60: #{tpu_custom_call.1} parent=5 // pred_fallthru
        _
    $region6: #{tpu_custom_call.1} parent=1 // loop_footer
      %s18 = sadd.s32 1, %s14
    $region7: #{tpu_custom_call.1} parent=1 // loop_footer_branch
      %13 = sbr.rel target = $region3
    $region8: #{tpu_custom_call.1} parent=1 // loop_exit
      _
    %481 = vsyncpa [#allocation4], 1
    %s482 = scalar_lea.sflag [#allocation4], 1
    %483 = vsyncpa %s482, 1

</llo_original>
